<compile_context>
chip_gen: v7x
topology: tpu7x:2x2x1
jax: 0.10.0
libtpu: 0.0.40
codegen_flags: <defaults>
</compile_context>

<pallas_src>
import functools

import jax
import jax.numpy as jnp
from jax.experimental import pallas as pl
from jax.experimental.pallas import tpu as pltpu


# ----------------------------------------------------------------------------
# PA expert Pallas kernel
# ----------------------------------------------------------------------------
def _pa_expert_kernel(xflat_ref, w_ref, b_ref, o_ref, rhs_ref, *, ks, wp, h):
    # xflat_ref: (1, C, L)           per-channel flattened, zero-padded image
    # w_ref:     (C, ks*ks*C)        weight, columns ordered (kh, kw, c_in)
    # b_ref:     (C, 1)              bias
    # o_ref:     (1, C, H*Wp)        extended-width output (cols 0..W-1 valid)
    # rhs_ref:   (ks*ks*C, H*Wp)     VMEM scratch: im2col matrix
    C = w_ref.shape[0]
    hwp = h * wp

    # Build im2col: each conv tap is just a lane-shifted slice of the single
    # flattened padded buffer (no reshape, no per-tap full-image copy).
    for kh in range(ks):
        for kw in range(ks):
            t = kh * ks + kw
            s = kh * wp + kw
            rhs_ref[t * C:(t + 1) * C, :] = xflat_ref[0, :, s:s + hwp]

    # One MXU matmul, f32 accumulation, lane-dense (H*Wp) output.
    conv = jnp.dot(w_ref[...], rhs_ref[...], preferred_element_type=jnp.float32)
    attn = jax.nn.sigmoid(conv + b_ref[...])

    # Centre tap of the window IS the original (un-padded) image: reuse it for
    # the sigmoid gate instead of streaming the image in a second time.
    sc = (ks // 2) * wp + (ks // 2)
    xc = xflat_ref[0, :, sc:sc + hwp]
    o_ref[0, :, :] = (attn * xc).astype(o_ref.dtype)


def pa_expert_forward(x, weight, bias, kernel_size):
    """Pixel-attention expert: sigmoid(Conv2d(x; weight, bias, pad=ks//2)) * x.

    x: (N, C, H, W); weight: (C, C, ks, ks) (OIHW); bias: (C,).  Returns (N, C, H, W).
    """
    N, C, H, W = x.shape
    ks = int(kernel_size)
    p = ks // 2
    hp, wp = H + 2 * p, W + 2 * p
    hwp = H * wp
    K = ks * ks * C

    # The padded+flattened image is the ONLY image-sized operand passed to the
    # kernel.  Rows are padded by (p, p+1): the extra zero row gives the slack
    # so every conv-tap slice [kh*wp+kw : kh*wp+kw + H*wp] stays in bounds.
    xflat = jnp.pad(x, ((0, 0), (0, 0), (p, p + 1), (p, p))).reshape(
        N, C, (hp + 1) * wp)
    # Weight as (C_out, ks*ks*C_in), columns ordered (kh, kw, c_in) to match
    # the im2col row ordering built inside the kernel.
    w2d = jnp.transpose(weight, (0, 2, 3, 1)).reshape(C, K)
    b2d = bias.reshape(C, 1)

    kern = functools.partial(_pa_expert_kernel, ks=ks, wp=wp, h=H)

    # NOTE: the block shapes below are legal because they equal the full array
    # dims; any future tiling of C or the flattened-spatial axis must respect
    # the (8, 128) tile constraint.
    out_ext = pl.pallas_call(
        kern,
        out_shape=jax.ShapeDtypeStruct((N, C, hwp), x.dtype),
        grid_spec=pltpu.PrefetchScalarGridSpec(
            num_scalar_prefetch=0,
            grid=(N,),
            in_specs=[
                pl.BlockSpec((1, C, (hp + 1) * wp), lambda n: (n, 0, 0)),
                pl.BlockSpec((C, K), lambda n: (0, 0)),
                pl.BlockSpec((C, 1), lambda n: (0, 0)),
            ],
            out_specs=pl.BlockSpec((1, C, hwp), lambda n: (n, 0, 0)),
            scratch_shapes=[pltpu.VMEM((K, hwp), x.dtype)],
        ),
        compiler_params=pltpu.CompilerParams(
            dimension_semantics=("parallel",),
            vmem_limit_bytes=48 * 1024 * 1024,
        ),
    )(xflat, w2d, b2d)

    # Drop the 2*p garbage border columns of each extended-width row.
    return out_ext.reshape(N, C, H, wp)[..., :W]


def pa_expert_reference(x, weight, bias, kernel_size):
    """Pure-JAX reference for one PA expert (lax conv, highest precision)."""
    del kernel_size
    conv = jax.lax.conv_general_dilated(
        x, weight, window_strides=(1, 1), padding="SAME",
        dimension_numbers=("NCHW", "OIHW", "NCHW"),
        precision=jax.lax.Precision.HIGHEST,
    ) + bias.reshape(1, -1, 1, 1)
    return jax.nn.sigmoid(conv) * x


# ----------------------------------------------------------------------------
# GN_gate routing head (plain JAX — tiny, data-dependent)
# ----------------------------------------------------------------------------
def _conv1x1(x, w, b):
    # x: (N, C_in, H, W), w: (C_out, C_in), b: (C_out,)
    return jnp.einsum("nchw,oc->nohw", x, w) + b[None, :, None, None]


def _adaptive_avg_pool(x, out_size):
    # Matches nn.AdaptiveAvgPool2d when H, W are divisible by out_size.
    N, C, H, W = x.shape
    assert H % out_size == 0 and W % out_size == 0
    return x.reshape(N, C, out_size, H // out_size,
                     out_size, W // out_size).mean(axis=(3, 5))


def _cv_squared(v, eps):
    v = v.astype(jnp.float32)
    if v.shape[0] == 1:
        return jnp.zeros((), jnp.float32)
    return jnp.var(v, ddof=1) / (jnp.mean(v) ** 2 + eps)


def gn_gate_forward(x, gp, *, k, num_experts, pool_sizes, eps=1e-10):
    h = jax.nn.relu(_conv1x1(x, gp["w1"], gp["b1"]))
    h = jax.nn.relu(_conv1x1(h, gp["w2"], gp["b2"]))
    h = _adaptive_avg_pool(h, pool_sizes)
    h = _conv1x1(h, gp["w3"], gp["b3"])
    feats = h.reshape(h.shape[0], -1)
    logits = feats @ gp["w_gate"]                              # (N, E)

    expert_logits, expert_indices = jax.lax.top_k(logits, k)   # (N, k)
    expert_gates = jax.nn.softmax(expert_logits, axis=1)       # (N, k)

    # Scatter the top-k gates into a dense (N, E) matrix (zeros elsewhere).
    gates = jnp.sum(
        jax.nn.one_hot(expert_indices, num_experts, dtype=expert_gates.dtype)
        * expert_gates[..., None], axis=1)

    importance = gates.sum(axis=0)
    load = (gates > 0).astype(jnp.float32).sum(axis=0)
    gating_loss = _cv_squared(importance, eps) + _cv_squared(load, eps)
    return gates, gating_loss


def pa_moe_gate_forward(x, expert_params, gating_params, *, kernel_sizes,
                        k, num_experts, pool_sizes, loss_coef,
                        pa_fn=pa_expert_forward):
    gates, gating_loss = gn_gate_forward(
        x, gating_params, k=k, num_experts=num_experts, pool_sizes=pool_sizes)
    # Dense mixture: unselected experts have an exactly-zero gate, so this is
    # numerically identical to the per-sample sparse dispatch in the PyTorch code.
    out = jnp.zeros_like(x)
    for e, ks in enumerate(kernel_sizes):
        w, b = expert_params[e]
        out = out + gates[:, e][:, None, None, None] * pa_fn(x, w, b, ks)
    return out, loss_coef * gating_loss


# ----------------------------------------------------------------------------
# Self-test
# ----------------------------------------------------------------------------
if __name__ == "__main__":
    key = jax.random.PRNGKey(0)
    N, C, H, W = 2, 4, 16, 16
    kernel_sizes = (1, 3, 7, 11)
    num_experts = len(kernel_sizes)
    k = 2
    hid_channels, pool_channels, pool_sizes = 32, 8, 4
    loss_coef = 0.1

    keys = jax.random.split(key, 10)
    x = jax.random.normal(keys[0], (N, C, H, W), dtype=jnp.float32)

    def uinit(kk, shape, fan_in):
        b = 1.0 / (fan_in ** 0.5)
        return jax.random.uniform(kk, shape, jnp.float32, -b, b)

    expert_params = []
    for i, ks in enumerate(kernel_sizes):
        kw_, kb_ = jax.random.split(keys[1 + i])
        fan = C * ks * ks
        expert_params.append((uinit(kw_, (C, C, ks, ks), fan),
                              uinit(kb_, (C,), fan)))

    gk = jax.random.split(keys[8], 7)
    gating_params = {
        "w1": uinit(gk[0], (hid_channels, C), C),
        "b1": uinit(gk[1], (hid_channels,), C),
        "w2": uinit(gk[2], (pool_channels, hid_channels), hid_channels),
        "b2": uinit(gk[3], (pool_channels,), hid_channels),
        "w3": uinit(gk[4], (pool_channels, pool_channels), pool_channels),
        "b3": uinit(gk[5], (pool_channels,), pool_channels),
        # Spec initialises w_gate to zeros; use small random values here so the
        # top-k routing path is actually exercised.
        "w_gate": 0.1 * jax.random.normal(
            gk[6], (pool_channels * pool_sizes ** 2, num_experts), jnp.float32),
    }

    out, loss = pa_moe_gate_forward(
        x, expert_params, gating_params, kernel_sizes=kernel_sizes, k=k,
        num_experts=num_experts, pool_sizes=pool_sizes, loss_coef=loss_coef,
        pa_fn=pa_expert_forward)
    out = jax.block_until_ready(out)
    loss = jax.block_until_ready(loss)

    ref_out, ref_loss = pa_moe_gate_forward(
        x, expert_params, gating_params, kernel_sizes=kernel_sizes, k=k,
        num_experts=num_experts, pool_sizes=pool_sizes, loss_coef=loss_coef,
        pa_fn=pa_expert_reference)

    assert out.shape == (N, C, H, W)
    assert jnp.allclose(out, ref_out, atol=5e-4, rtol=5e-4), "output mismatch vs reference"
    assert jnp.allclose(loss, ref_loss, atol=1e-6, rtol=1e-6), "loss mismatch vs reference"

    print("KERNEL_OK")
</pallas_src>

<mosaic_0001>
module attributes {stable_mosaic.version = 11 : i64} {
  func.func @_pa_expert_kernel(%arg0: i32, %arg1: memref<1x4x272xf32, #tpu.memory_space<vmem>>, %arg2: memref<4x4xf32, #tpu.memory_space<vmem>>, %arg3: memref<4x1xf32, #tpu.memory_space<vmem>>, %arg4: memref<1x4x256xf32, #tpu.memory_space<vmem>>, %arg5: memref<4x256xf32, #tpu.memory_space<vmem>>) attributes {dimension_semantics = [#tpu.dimension_semantics<parallel>], iteration_bounds = array<i64: 2>, scalar_prefetch = 0 : i64, scratch_operands = 1 : i64, tpu.core_type = #tpu.core_type<tc>, window_params = [{transform_indices = @transform_0, window_bounds = array<i64: 1, 4, 272>}, {pipeline_mode = #tpu.pipeline_mode<synchronous>, transform_indices = @transform_1, window_bounds = array<i64: 4, 4>}, {pipeline_mode = #tpu.pipeline_mode<synchronous>, transform_indices = @transform_2, window_bounds = array<i64: 4, 1>}, {transform_indices = @transform_3, window_bounds = array<i64: 1, 4, 256>}]} {
    %c0 = arith.constant 0 : index
    %c0_0 = arith.constant 0 : index
    %c0_1 = arith.constant 0 : index
    %0 = vector.load %arg1[%c0, %c0_0, %c0_1] : memref<1x4x272xf32, #tpu.memory_space<vmem>>, vector<1x4x256xf32>
    %1 = vector.shape_cast %0 : vector<1x4x256xf32> to vector<4x256xf32>
    %c0_2 = arith.constant 0 : index
    %c0_3 = arith.constant 0 : index
    %2 = vector.load %arg5[%c0_2, %c0_3] : memref<4x256xf32, #tpu.memory_space<vmem>>, vector<4x256xf32>
    tpu.vector_store %arg5[%c0_2, %c0_3], %1 {strides = array<i32>} : memref<4x256xf32, #tpu.memory_space<vmem>>, vector<4x256xf32>,
    %c0_4 = arith.constant 0 : index
    %c0_5 = arith.constant 0 : index
    %3 = vector.load %arg2[%c0_4, %c0_5] : memref<4x4xf32, #tpu.memory_space<vmem>>, vector<4x4xf32>
    %c0_6 = arith.constant 0 : index
    %c0_7 = arith.constant 0 : index
    %4 = vector.load %arg5[%c0_6, %c0_7] : memref<4x256xf32, #tpu.memory_space<vmem>>, vector<4x256xf32>
    %cst = arith.constant dense<0.000000e+00> : vector<4x256xf32>
    %5 = tpu.matmul %3, %4, %cst {dimension_numbers = #tpu.dot_dimension_numbers<[1], [0], [0], [1], [0, 0, 1, 1], [], []>} : vector<4x4xf32>, vector<4x256xf32>, vector<4x256xf32> -> vector<4x256xf32>
    %c0_8 = arith.constant 0 : index
    %c0_9 = arith.constant 0 : index
    %6 = vector.load %arg3[%c0_8, %c0_9] : memref<4x1xf32, #tpu.memory_space<vmem>>, vector<4x1xf32>
    %7 = vector.broadcast %6 : vector<4x1xf32> to vector<4x256xf32>
    %8 = arith.addf %5, %7 : vector<4x256xf32>
    %9 = arith.negf %8 : vector<4x256xf32>
    %10 = math.exp %9 : vector<4x256xf32>
    %cst_10 = arith.constant 1.000000e+00 : f32
    %11 = vector.broadcast %cst_10 : f32 to vector<4x256xf32>
    %12 = arith.addf %11, %10 : vector<4x256xf32>
    %13 = arith.divf %11, %12 : vector<4x256xf32>
    %c0_11 = arith.constant 0 : index
    %c0_12 = arith.constant 0 : index
    %c0_13 = arith.constant 0 : index
    %14 = vector.load %arg1[%c0_11, %c0_12, %c0_13] : memref<1x4x272xf32, #tpu.memory_space<vmem>>, vector<1x4x256xf32>
    %15 = vector.shape_cast %14 : vector<1x4x256xf32> to vector<4x256xf32>
    %16 = arith.mulf %13, %15 : vector<4x256xf32>
    %c0_14 = arith.constant 0 : index
    %c0_15 = arith.constant 0 : index
    %c0_16 = arith.constant 0 : index
    %17 = vector.load %arg4[%c0_14, %c0_15, %c0_16] : memref<1x4x256xf32, #tpu.memory_space<vmem>>, vector<1x4x256xf32>
    %18 = vector.shape_cast %17 : vector<1x4x256xf32> to vector<4x256xf32>
    %19 = vector.shape_cast %16 : vector<4x256xf32> to vector<1x4x256xf32>
    tpu.vector_store %arg4[%c0_14, %c0_15, %c0_16], %19 {strides = array<i32>} : memref<1x4x256xf32, #tpu.memory_space<vmem>>, vector<1x4x256xf32>,
    return
  }
  func.func @transform_0(%arg0: i32) -> (i32, i32, i32) {
    %c0_i32 = arith.constant 0 : i32
    %c0_i32_0 = arith.constant 0 : i32
    %c0_i32_1 = arith.constant 0 : i32
    return %arg0, %c0_i32, %c0_i32_0 : i32, i32, i32
  }
  func.func @transform_1(%arg0: i32) -> (i32, i32) {
    %c0_i32 = arith.constant 0 : i32
    %c0_i32_0 = arith.constant 0 : i32
    %c0_i32_1 = arith.constant 0 : i32
    return %c0_i32, %c0_i32_0 : i32, i32
  }
  func.func @transform_2(%arg0: i32) -> (i32, i32) {
    %c0_i32 = arith.constant 0 : i32
    %c0_i32_0 = arith.constant 0 : i32
    %c0_i32_1 = arith.constant 0 : i32
    return %c0_i32, %c0_i32_0 : i32, i32
  }
  func.func @transform_3(%arg0: i32) -> (i32, i32, i32) {
    %c0_i32 = arith.constant 0 : i32
    %c0_i32_0 = arith.constant 0 : i32
    %c0_i32_1 = arith.constant 0 : i32
    return %arg0, %c0_i32, %c0_i32_0 : i32, i32, i32
  }
}

</mosaic_0001>

<llo_original>
// kernel: tpu_custom_call.1
$region0: #{tpu_custom_call.1}
  #allocation0 [shape = 'u32[]', space=smem, size = 0x4, offset = 0x4, fixed_abs, tag = 'smem constant byte address 0x4 - core index']
  #allocation1 [shape = 'u32[144,128]{1,0:T(1,128)}', space=vmem, size = 0x12000, scoped, tag = 'internal scratch']
  #allocation2 [shape = 'f32[4,256]{1,0:T(4,128)}', space=vmem, size = 0x1000, scoped, tag = 'scratch operand']
  %s0 = inlined_call_operand.hbm [shape: f32[2,4,272], index: 0, kind: input, shape index: {}]
  %s1 = inlined_call_operand.vmem [shape: f32[4,4], index: 1, kind: input, shape index: {}]
  %s2 = inlined_call_operand.vmem [shape: f32[4,1], index: 2, kind: input, shape index: {}]
  %s3 = inlined_call_operand.hbm [shape: f32[2,4,256], index: 3, kind: output, shape index: {}]
  %s4 = sld [smem:[#allocation0]]
  $region49: #{tpu_custom_call.1} parent=0
    _
  %s6 = ssub.s32 1, %s4
  %s7 = scalar_select 0, %s6, %s4
  $region1: #{tpu_custom_call.1} parent=0
    #allocation3 [shape = 'u8[12288]{0}', space=vmem, size = 0x3000, scoped, tag = 'input window, operand 0']
    #allocation4 [shape = 's32[2]{0}', space=sflag, size = 0x8, scoped, tag = 'scoped memory for tpu_custom_call.1']
    #allocation5 [shape = 's32[2]{0}', space=sflag, size = 0x8, scoped, tag = 'scoped memory for tpu_custom_call.1']
    #allocation6 [shape = 'u8[8192]{0}', space=vmem, size = 0x2000, scoped, tag = 'output window, operand 0']
    %8 = vsyncpa [#allocation4], 0
    %s9 = scalar_lea.sflag [#allocation4], 1
    %10 = vsyncpa %s9, 0
    %11 = vsyncpa [#allocation5], 0
    %s12 = scalar_lea.sflag [#allocation5], 1
    %13 = vsyncpa %s12, 0
    loop: start=0, step=1, limit=4
    $region2: #{tpu_custom_call.1} parent=1 // loop_pre_header
      _
    $region3: #{tpu_custom_call.1} parent=1 // loop_header
      %s15 = sphi 0, %s19
      %p16 = scmp.ge.s32.totalorder %s15, 4
      %s25 = sphi 0, %s27
      %s28 = sphi 0, %s25
      %s29 = sphi 0, %s28
      %s45 = sphi 0, %s29
      %s49 = sphi 0, %s49
      %s51 = sphi 0, %s49
      %s52 = sphi 0, %s51
      %s66 = sphi 0, %s52
      %s70 = sphi 0, %s70
      %s72 = sphi 0, %s70
      %s73 = sphi 0, %s72
      %s87 = sphi 0, %s73
      %s93 = sphi 0, %s95
      %s96 = sphi 0, %s93
      %s97 = sphi 0, %s96
      %s113 = sphi 0, %s97
    $region4: #{tpu_custom_call.1} parent=1 // loop_header_branch
      %18 = sbr.rel (%p16) target = $region8
    $region5: #{tpu_custom_call.1} parent=1 // loop_body
      %s20 = ssub.s32 %s15, 1
      %s21 = ssub.s32 %s15, 2
      %s22 = sadd.s32 %s15, 1
      %s23 = ssub.s32 %s15, %s22
      %p24 = scmp.eq.s32.totalorder %s23, 0
      %s26 = sadd.s32 %s25, 1
      %s27 = scalar_select %p24, %s25, %s26
      %p30 = pneg %p24
      %p31 = scmp.eq.s32.totalorder %s15, 1
      %p32 = por %p30, %p31
      %p33 = scmp.ne.s32.totalorder %s25, %s28
      %p34 = scmp.eq.s32.totalorder %s15, 0
      %p35 = por %p33, %p34
      %p36 = scmp.ne.s32.totalorder %s25, %s28
      %p37 = scmp.eq.s32.totalorder %s20, 1
      %p38 = por %p36, %p37
      %p39 = scmp.ne.s32.totalorder %s28, %s29
      %p40 = scmp.eq.s32.totalorder %s20, 0
      %p41 = por %p39, %p40
      %p42 = scmp.ne.s32.totalorder %s28, %s29
      %p43 = scmp.eq.s32.totalorder %s21, 1
      %p44 = por %p42, %p43
      %p46 = scmp.ne.s32.totalorder %s29, %s45
      %p47 = scmp.eq.s32.totalorder %s21, 0
      %p48 = por %p46, %p47
      %s50 = sadd.s32 %s49, 1
      %p53 = scmp.eq.s32.totalorder %s15, 1
      %p54 = scmp.ne.s32.totalorder %s49, %s51
      %p55 = scmp.eq.s32.totalorder %s15, 0
      %p56 = por %p54, %p55
      %p57 = scmp.ne.s32.totalorder %s49, %s51
      %p58 = scmp.eq.s32.totalorder %s20, 1
      %p59 = por %p57, %p58
      %p60 = scmp.ne.s32.totalorder %s51, %s52
      %p61 = scmp.eq.s32.totalorder %s20, 0
      %p62 = por %p60, %p61
      %p63 = scmp.ne.s32.totalorder %s51, %s52
      %p64 = scmp.eq.s32.totalorder %s21, 1
      %p65 = por %p63, %p64
      %p67 = scmp.ne.s32.totalorder %s52, %s66
      %p68 = scmp.eq.s32.totalorder %s21, 0
      %p69 = por %p67, %p68
      %s71 = sadd.s32 %s70, 1
      %p74 = scmp.eq.s32.totalorder %s15, 1
      %p75 = scmp.ne.s32.totalorder %s70, %s72
      %p76 = scmp.eq.s32.totalorder %s15, 0
      %p77 = por %p75, %p76
      %p78 = scmp.ne.s32.totalorder %s70, %s72
      %p79 = scmp.eq.s32.totalorder %s20, 1
      %p80 = por %p78, %p79
      %p81 = scmp.ne.s32.totalorder %s72, %s73
      %p82 = scmp.eq.s32.totalorder %s20, 0
      %p83 = por %p81, %p82
      %p84 = scmp.ne.s32.totalorder %s72, %s73
      %p85 = scmp.eq.s32.totalorder %s21, 1
      %p86 = por %p84, %p85
      %p88 = scmp.ne.s32.totalorder %s73, %s87
      %p89 = scmp.eq.s32.totalorder %s21, 0
      %p90 = por %p88, %p89
      %s91 = ssub.s32 %s15, %s22
      %p92 = scmp.eq.s32.totalorder %s91, 0
      %s94 = sadd.s32 %s93, 1
      %s95 = scalar_select %p92, %s93, %s94
      %p98 = pneg %p92
      %p99 = scmp.eq.s32.totalorder %s15, 1
      %p100 = por %p98, %p99
      %p101 = scmp.ne.s32.totalorder %s93, %s96
      %p102 = scmp.eq.s32.totalorder %s15, 0
      %p103 = por %p101, %p102
      %p104 = scmp.ne.s32.totalorder %s93, %s96
      %p105 = scmp.eq.s32.totalorder %s20, 1
      %p106 = por %p104, %p105
      %p107 = scmp.ne.s32.totalorder %s96, %s97
      %p108 = scmp.eq.s32.totalorder %s20, 0
      %p109 = por %p107, %p108
      %p110 = scmp.ne.s32.totalorder %s96, %s97
      %p111 = scmp.eq.s32.totalorder %s21, 1
      %p112 = por %p110, %p111
      %p114 = scmp.ne.s32.totalorder %s97, %s113
      %p115 = scmp.eq.s32.totalorder %s21, 0
      %p116 = por %p114, %p115
      %p117 = scmp.le.s32.totalorder 1, %s15
      %p118 = scmp.lt.s32.totalorder %s15, 3
      %p119 = pnand %p117, %p118
      %p120 = pneg %p119
      // Predicated region
      $region9: #{tpu_custom_call.1} parent=5 // pred_check
        _
      $region10: #{tpu_custom_call.1} parent=5 // pred_check_branch
        %122 = sbr.rel (%p119) target = $region12
      $region11: #{tpu_custom_call.1} parent=5 // pred_region
        %s123 = ssub.s32 %s15, 1
        // Predicated region
        $region13: #{tpu_custom_call.1} parent=11 // pred_check
          %p124 = pneg %p62
        $region14: #{tpu_custom_call.1} parent=11 // pred_check_branch
          %126 = sbr.rel (%p124) target = $region16
        $region15: #{tpu_custom_call.1} parent=11 // pred_region
          _
        $region16: #{tpu_custom_call.1} parent=11 // pred_fallthru
          _
        // Predicated region
        $region17: #{tpu_custom_call.1} parent=11 // pred_check
          %p127 = pneg %p83
        $region18: #{tpu_custom_call.1} parent=11 // pred_check_branch
          %129 = sbr.rel (%p127) target = $region20
        $region19: #{tpu_custom_call.1} parent=11 // pred_region
          _
        $region20: #{tpu_custom_call.1} parent=11 // pred_fallthru
          _
      $region12: #{tpu_custom_call.1} parent=5 // pred_fallthru
        _
      %p130 = scmp.lt.s32.totalorder %s15, 2
      // Predicated region
      $region21: #{tpu_custom_call.1} parent=5 // pred_check
        %p131 = pneg %p130
      $region22: #{tpu_custom_call.1} parent=5 // pred_check_branch
        %133 = sbr.rel (%p131) target = $region24
      $region23: #{tpu_custom_call.1} parent=5 // pred_region
        // Predicated region
        $region25: #{tpu_custom_call.1} parent=23 // pred_check
          %p134 = pneg %p35
        $region26: #{tpu_custom_call.1} parent=23 // pred_check_branch
          %136 = sbr.rel (%p134) target = $region28
        $region27: #{tpu_custom_call.1} parent=23 // pred_region
          %s137 = sand.u32 %s25, 1
          %s138 = scalar_lea.sflag [#allocation4], %s137
          %s139 = sand.u32 %s25, 1
          %s140 = smul.addr %s139, 12
          %s141 = scalar_lea.vmem [#allocation3], %s140
          %s143 = ssub.s32 192, 192
          %144 = vsyncadd %s138, %s143
          %s145 = smul.addr %s15, 3
          %s146 = smul.addr %s145, 64
          %s147 = scalar_lea.hbm %s0, %s146
          %s149 = sshll.u32 %s141, 4
          %s150 = int_to_ptr.vmem [resolvable:$true] %s149
          %152 = dma.hbm_to_vmem [thread:$0]  %s147, 192, %s150, %s138
        $region28: #{tpu_custom_call.1} parent=23 // pred_fallthru
          _
      $region24: #{tpu_custom_call.1} parent=5 // pred_fallthru
        _
      %p153 = scmp.le.s32.totalorder 1, %s15
      %p154 = scmp.lt.s32.totalorder %s15, 3
      %p155 = pnand %p153, %p154
      %p156 = pneg %p155
      // Predicated region
      $region29: #{tpu_custom_call.1} parent=5 // pred_check
        _
      $region30: #{tpu_custom_call.1} parent=5 // pred_check_branch
        %158 = sbr.rel (%p155) target = $region32
      $region31: #{tpu_custom_call.1} parent=5 // pred_region
        %s159 = ssub.s32 %s15, 1
        %s160 = sand.u32 %s28, 1
        %s161 = scalar_lea.sflag [#allocation4], %s160
        %s162 = sand.u32 %s28, 1
        %s163 = smul.addr %s162, 12
        %s164 = scalar_lea.vmem [#allocation3], %s163
        // Predicated region
        $region33: #{tpu_custom_call.1} parent=31 // pred_check
          %p165 = pneg %p41
        $region34: #{tpu_custom_call.1} parent=31 // pred_check_branch
          %167 = sbr.rel (%p165) target = $region36
        $region35: #{tpu_custom_call.1} parent=31 // pred_region
          %168 = dma.done %s161, 192
        $region36: #{tpu_custom_call.1} parent=31 // pred_fallthru
          _
        %s169 = sand.u32 %s28, 1
        %s170 = scalar_lea.sflag [#allocation4], %s169
        %s171 = sand.u32 %s28, 1
        %s172 = smul.addr %s171, 12
        %s173 = scalar_lea.vmem [#allocation3], %s172
        %p174 = pneg %p41
        %p175 = pneg %p38
        %p176 = pneg %p62
        %p177 = pneg %p59
        %p178 = pneg %p83
        %p179 = pneg %p80
        %p180 = pneg %p109
        %p181 = pneg %p106
        %s182 = sand.u32 %s96, 1
        %s183 = scalar_lea.sflag [#allocation5], %s182
        %s184 = sand.u32 %s96, 1
        %s185 = smul.addr %s184, 8
        %s186 = scalar_lea.vmem [#allocation6], %s185
        %v187 = vld [vmem:[%s164] sm:$0xff]
        %188 = vst [vmem:[#allocation2] sm:$0xff] %v187
        %v189 = vld [vmem:[%s1] sm:$0xf]
        %v190 = vld [vmem:[#allocation2] sm:$0xff]
        %v191 = vld [vmem:[%s2] sm:$0xf]
        %193 = vset.pattern.permute.xlu0 0
        %194 = vperm.xlu0 %193, %v191
        %v195 = vpop.permute.xlu0 %194
        %v198 = vcombine.high %v190, %v190
        %vm199 = vcmask 31744
        %v201 = vsel %vm199, %v189, 0
        %vm203 = vcmask 1043456
        %v204 = vsel %vm203, %v190, 0
        %v206 = vsel %vm203, %v198, 0
        %208 = vmatprep.subr.mxu0 %v206
        %209 = vmatpush1.msra.mxu0 %v204
        %210 = vmatprep.subr.mxu0 0.0
        %211 = vmatpush1.msra.mxu0 0.0
        %212 = vmatprep.subr.mxu0 0.0
        %213 = vmatpush1.msra.mxu0 0.0
        %214 = vmatprep.subr.mxu0 0.0
        %215 = vmatpush1.msra.mxu0 0.0
        %216 = vmatprep.subr.mxu0 0.0
        %217 = vmatpush1.msra.mxu0 0.0
        %218 = vmatprep.subr.mxu0 0.0
        %219 = vmatpush1.msra.mxu0 0.0
        %220 = vmatprep.subr.mxu0 0.0
        %221 = vmatpush1.msra.mxu0 0.0
        %222 = vmatprep.subr.mxu0 0.0
        %223 = vmatpush1.msra.mxu0 0.0
        %224 = vmatprep.subr.mxu0 0.0
        %225 = vmatpush1.msra.mxu0 0.0
        %226 = vmatprep.subr.mxu0 0.0
        %227 = vmatpush1.msra.mxu0 0.0
        %228 = vmatprep.subr.mxu0 0.0
        %229 = vmatpush1.msra.mxu0 0.0
        %230 = vmatprep.subr.mxu0 0.0
        %231 = vmatpush1.msra.mxu0 0.0
        %232 = vmatprep.subr.mxu0 0.0
        %233 = vmatpush1.msra.mxu0 0.0
        %234 = vmatprep.subr.mxu0 0.0
        %235 = vmatpush1.msra.mxu0 0.0
        %236 = vmatprep.subr.mxu0 0.0
        %237 = vmatpush1.msra.mxu0 0.0
        %238 = vmatprep.subr.mxu0 0.0
        %239 = vmatpush1.msra.mxu0 0.0
        %240 = vmatprep.subr.mxu0 0.0
        %241 = vmatpush1.msra.mxu0 0.0
        %242 = vmatprep.subr.mxu0 0.0
        %243 = vmatpush1.msra.mxu0 0.0
        %244 = vmatprep.subr.mxu0 0.0
        %245 = vmatpush1.msra.mxu0 0.0
        %246 = vmatprep.subr.mxu0 0.0
        %247 = vmatpush1.msra.mxu0 0.0
        %248 = vmatprep.subr.mxu0 0.0
        %249 = vmatpush1.msra.mxu0 0.0
        %250 = vmatprep.subr.mxu0 0.0
        %251 = vmatpush1.msra.mxu0 0.0
        %252 = vmatprep.subr.mxu0 0.0
        %253 = vmatpush1.msra.mxu0 0.0
        %254 = vmatprep.subr.mxu0 0.0
        %255 = vmatpush1.msra.mxu0 0.0
        %256 = vmatprep.subr.mxu0 0.0
        %257 = vmatpush1.msra.mxu0 0.0
        %258 = vmatprep.subr.mxu0 0.0
        %259 = vmatpush1.msra.mxu0 0.0
        %260 = vmatprep.subr.mxu0 0.0
        %261 = vmatpush1.msra.mxu0 0.0
        %262 = vmatprep.subr.mxu0 0.0
        %263 = vmatpush1.msra.mxu0 0.0
        %264 = vmatprep.subr.mxu0 0.0
        %265 = vmatpush1.msra.mxu0 0.0
        %266 = vmatprep.subr.mxu0 0.0
        %267 = vmatpush1.msra.mxu0 0.0
        %268 = vmatprep.subr.mxu0 0.0
        %269 = vmatpush1.msra.mxu0 0.0
        %270 = vmatprep.subr.mxu0 0.0
        %271 = vmatpush1.msra.mxu0 0.0
        %272 = vmatprep.mubr.f32.mxu0 0.0
        %273 = vmatmul.mubr.f32.gmra.mrb[0].mxu0 %v201
        %v274 = vpop.f32.mrb[0].mxu0
        %v275 = vadd.f32 %v195, %v274
        %v276 = vpop.f32.mrb[0].mxu0
        %v277 = vadd.f32 %v195, %v276
        %278 = vdwg.mxu0
        %v279 = vxor.u32 %v275, 2147483648
        %v280 = vxor.u32 %v277, 2147483648
        %v281 = vmul.f32 %v279, 1.442695
        %v282 = vpow.pop %v281
        %v283 = vmul.f32 %v280, 1.442695
        %v284 = vpow.pop %v283
        %v285 = vadd.f32 %v282, 1.0
        %v286 = vadd.f32 %v284, 1.0
        %v287 = vrcp.pop %v285
        %v288 = vmul.f32 1.0, %v287
        %v289 = vrcp.pop %v286
        %v290 = vmul.f32 1.0, %v289
        %v291 = vld [vmem:[%s164] sm:$0xff]
        %v293 = vcombine.high %v291, %v291
        %v295 = vmul.f32 %v288, %v291
        %v296 = vmul.f32 %v290, %v293
        %v299 = vcombine.low %v295, %v296
        %301 = vst [vmem:[%s186] sm:$0xff] %v299
        %s302 = sand.u32 %s96, 1
        %s303 = scalar_lea.sflag [#allocation5], %s302
        %s304 = sand.u32 %s96, 1
        %s305 = smul.addr %s304, 8
        %s306 = scalar_lea.vmem [#allocation6], %s305
        // Predicated region
        $region37: #{tpu_custom_call.1} parent=31 // pred_check
          %p307 = pneg %p106
        $region38: #{tpu_custom_call.1} parent=31 // pred_check_branch
          %309 = sbr.rel (%p307) target = $region40
        $region39: #{tpu_custom_call.1} parent=31 // pred_region
          %s311 = ssub.s32 128, 128
          %312 = vsyncadd %s303, %s311
          %s313 = smul.addr %s20, 2
          %s314 = smul.addr %s313, 64
          %s315 = scalar_lea.hbm %s3, %s314
          %s317 = sshll.u32 %s306, 4
          %s318 = int_to_ptr.vmem [resolvable:$true] %s317
          %320 = dma.vmem_to_hbm [thread:$0]  %s318, 128, %s315, %s303
        $region40: #{tpu_custom_call.1} parent=31 // pred_fallthru
          _
      $region32: #{tpu_custom_call.1} parent=5 // pred_fallthru
        _
      %p321 = scmp.le.s32.totalorder 2, %s15
      // Predicated region
      $region41: #{tpu_custom_call.1} parent=5 // pred_check
        %p322 = pneg %p321
      $region42: #{tpu_custom_call.1} parent=5 // pred_check_branch
        %324 = sbr.rel (%p322) target = $region44
      $region43: #{tpu_custom_call.1} parent=5 // pred_region
        %s325 = ssub.s32 %s15, 2
        // Predicated region
        $region45: #{tpu_custom_call.1} parent=43 // pred_check
          %p326 = pneg %p112
        $region46: #{tpu_custom_call.1} parent=43 // pred_check_branch
          %328 = sbr.rel (%p326) target = $region48
        $region47: #{tpu_custom_call.1} parent=43 // pred_region
          %s329 = sand.u32 %s97, 1
          %s330 = scalar_lea.sflag [#allocation5], %s329
          %s331 = sand.u32 %s97, 1
          %s332 = smul.addr %s331, 8
          %s333 = scalar_lea.vmem [#allocation6], %s332
          %334 = dma.done %s330, 128
        $region48: #{tpu_custom_call.1} parent=43 // pred_fallthru
          _
      $region44: #{tpu_custom_call.1} parent=5 // pred_fallthru
        _
    $region6: #{tpu_custom_call.1} parent=1 // loop_footer
      %s19 = sadd.s32 1, %s15
    $region7: #{tpu_custom_call.1} parent=1 // loop_footer_branch
      %14 = sbr.rel target = $region3
    $region8: #{tpu_custom_call.1} parent=1 // loop_exit
      _
    %335 = vsyncpa [#allocation4], 1
    %s336 = scalar_lea.sflag [#allocation4], 1
    %337 = vsyncpa %s336, 1
    %338 = vsyncpa [#allocation5], 1
    %s339 = scalar_lea.sflag [#allocation5], 1
    %340 = vsyncpa %s339, 1

</llo_original>
